<compile_context>
chip_gen: v7x
topology: tpu7x:2x2x1
jax: 0.10.0
libtpu: 0.0.40
codegen_flags: <defaults>
</compile_context>

<pallas_src>
import math

import jax
import jax.numpy as jnp
from jax.experimental import pallas as pl
from jax.experimental.pallas import tpu as pltpu


def _round_up(n, m):
    return ((n + m - 1) // m) * m


def _pick_block_b(B, F, lay4, block_b):
    """Batch-tile size: clamp vs. a VMEM budget, keep >=2 grid steps when possible."""
    lane = lambda n: _round_up(max(n, 1), 128)
    # double-buffered streamed f32 blocks: x, eps, [z|mu|sigma], kl_row (per batch row)
    bytes_per_row = 8 * (lane(F) + lane(lay4) + lane(3 * lay4) + lane(1))
    budget = 24 * 1024 * 1024          # headroom under the 32 MiB scoped limit (v7x-safe)
    tb = max(16, min(block_b, (budget // bytes_per_row) // 16 * 16))
    if B <= tb:                        # split small/medium batches across >=2 grid steps
        tb = max(16, _round_up((B + 1) // 2, 16))
    return tb


def encoder_forward(x, params, eps, *, block_b=256):
    """VAE-encoder forward.

    x:   (B, S, F) float32   (torch.flatten(x, start_dim=1) -> (B, S*F))
    eps: (B, lay4) float32   standard-normal noise for the reparameterization
    returns z: (B, lay4) f32, kl: scalar f32, aux=(mu, sigma)
    """
    B = x.shape[0]
    x_flat = x.reshape(B, -1)
    F = x_flat.shape[1]
    w1, b1, w2, b2, w3, b3, wm, bm, wv, bv = params
    lay4 = wm.shape[1]

    # Fuse mean / var projections into a single matmul (shared LHS).
    wmv = jnp.concatenate([wm, wv], axis=1)          # (lay3, 2*lay4)
    bmv = jnp.concatenate([bm, bv], axis=1)          # (1, 2*lay4)

    # bf16 weights for the MXU (tiny, cast once); activations stay f32 in HBM.
    bf = jnp.bfloat16
    w1b, w2b, w3b, wmvb = (w.astype(bf) for w in (w1, w2, w3, wmv))

    tb = _pick_block_b(B, F, lay4, block_b)
    b_pad = _round_up(B, tb)
    if b_pad != B:                       # f32 zero-pad only when needed (no dtype cast pass)
        x_flat = jnp.pad(x_flat, ((0, b_pad - B), (0, 0)))
        eps = jnp.pad(eps, ((0, b_pad - B), (0, 0)))

    out_w = 3 * lay4                     # packed [ z | mu | sigma ]

    def kernel(x_ref, w1_ref, b1_ref, w2_ref, b2_ref, w3_ref, b3_ref,
               wmv_ref, bmv_ref, eps_ref, zms_ref, klr_ref):
        # linear1 (no activation, matches the reference module)
        h1 = jnp.dot(x_ref[...].astype(bf), w1_ref[...],
                     preferred_element_type=jnp.float32) + b1_ref[...]
        # relu(linear2)
        h2 = jnp.maximum(
            jnp.dot(h1.astype(bf), w2_ref[...],
                    preferred_element_type=jnp.float32) + b2_ref[...], 0.0)
        # sigmoid(linear3) as one EUP op (tanh form == exact sigmoid)
        s3 = jnp.dot(h2.astype(bf), w3_ref[...],
                     preferred_element_type=jnp.float32) + b3_ref[...]
        h3 = 0.5 * (jnp.tanh(0.5 * s3) + 1.0)
        # fused [mean | logvar] head
        mv = jnp.dot(h3.astype(bf), wmv_ref[...],
                     preferred_element_type=jnp.float32) + bmv_ref[...]
        mu = mv[:, :lay4]
        sigma = jnp.exp(mv[:, lay4:]) + 1e-6
        # reparameterization (eps stays f32 end-to-end)
        z = mu + sigma * eps_ref[...]
        # direct lane-slice stores into the VMEM-resident output block
        zms_ref[:, 0 * lay4:1 * lay4] = z
        zms_ref[:, 1 * lay4:2 * lay4] = mu
        zms_ref[:, 2 * lay4:3 * lay4] = sigma
        # per-row KL partial keeps the batch grid axis fully parallel
        klr_ref[...] = jnp.sum(sigma * sigma + mu * mu - jnp.log(sigma) - 0.5,
                               axis=-1, keepdims=True)

    resident = lambda i: (0, 0)          # weights/biases: DMA'd once, stay in VMEM
    streamed = lambda i: (i, 0)          # x / eps / outputs: one block per grid step

    zms, klr = pl.pallas_call(
        kernel,
        grid=(b_pad // tb,),
        in_specs=[
            pl.BlockSpec((tb, F), streamed),
            pl.BlockSpec(w1b.shape, resident), pl.BlockSpec(b1.shape, resident),
            pl.BlockSpec(w2b.shape, resident), pl.BlockSpec(b2.shape, resident),
            pl.BlockSpec(w3b.shape, resident), pl.BlockSpec(b3.shape, resident),
            pl.BlockSpec(wmvb.shape, resident), pl.BlockSpec(bmv.shape, resident),
            pl.BlockSpec((tb, lay4), streamed),
        ],
        out_specs=(pl.BlockSpec((tb, out_w), streamed),
                   pl.BlockSpec((tb, 1), streamed)),
        out_shape=(jax.ShapeDtypeStruct((b_pad, out_w), jnp.float32),
                   jax.ShapeDtypeStruct((b_pad, 1), jnp.float32)),
        compiler_params=pltpu.CompilerParams(
            dimension_semantics=("parallel",),
            vmem_limit_bytes=32 * 1024 * 1024,
        ),
    )(x_flat, w1b, b1, w2b, b2, w3b, b3, wmvb, bmv, eps)

    z = zms[:B, :lay4]
    mu = zms[:B, lay4:2 * lay4]
    sigma = zms[:B, 2 * lay4:]
    kl = jnp.sum(klr[:B, 0])
    return z, kl, (mu, sigma)


def init_linear(key, fan_in, fan_out):
    """Deterministic init mimicking nn.Linear default (uniform +-1/sqrt(fan_in))."""
    kw, kb = jax.random.split(key)
    bound = 1.0 / math.sqrt(fan_in)
    w = jax.random.uniform(kw, (fan_in, fan_out), jnp.float32, -bound, bound)
    b = jax.random.uniform(kb, (1, fan_out), jnp.float32, -bound, bound)
    return w, b


if __name__ == "__main__":
    # Small shapes consistent with the module: data is (N, 1, input_size).
    B, S = 2, 1
    input_size = 32
    lay1, lay2, lay3, lay4 = 64, 48, 32, 16

    root = jax.random.PRNGKey(0)
    kx, keps, k1, k2, k3, km, kv = jax.random.split(root, 7)

    x = jax.random.normal(kx, (B, S, input_size), jnp.float32)
    eps = jax.random.normal(keps, (B, lay4), jnp.float32)  # N(0,1) sample

    w1, b1 = init_linear(k1, S * input_size, lay1)
    w2, b2 = init_linear(k2, lay1, lay2)
    w3, b3 = init_linear(k3, lay2, lay3)
    wm, bm = init_linear(km, lay3, lay4)
    wv, bv = init_linear(kv, lay3, lay4)
    params = (w1, b1, w2, b2, w3, b3, wm, bm, wv, bv)

    z, kl, (mu, sigma) = encoder_forward(x, params, eps)
    jax.block_until_ready((z, kl, mu, sigma))

    # Pure-JAX reference (mirrors the kernel's bf16 matmul operands, exact sigmoid).
    bf = jnp.bfloat16
    mm = lambda a, w: jnp.dot(a.astype(bf), w.astype(bf),
                              preferred_element_type=jnp.float32)
    xf = x.reshape(B, -1)
    h1 = mm(xf, w1) + b1
    h2 = jnp.maximum(mm(h1, w2) + b2, 0.0)
    h3 = jax.nn.sigmoid(mm(h2, w3) + b3)
    mu_ref = mm(h3, wm) + bm
    sigma_ref = jnp.exp(mm(h3, wv) + bv) + 1e-6
    z_ref = mu_ref + sigma_ref * eps
    kl_ref = jnp.sum(sigma_ref ** 2 + mu_ref ** 2 - jnp.log(sigma_ref) - 0.5)

    # External checks vs. reference (bf16 matmul operands on both sides).
    assert jnp.allclose(mu, mu_ref, atol=2e-2, rtol=2e-2), "mu mismatch"
    assert jnp.allclose(sigma, sigma_ref, atol=2e-2, rtol=2e-2), "sigma mismatch"
    assert jnp.allclose(z, z_ref, atol=2e-2, rtol=2e-2), "z mismatch"
    assert jnp.allclose(kl, kl_ref, atol=1e-1, rtol=2e-2), "kl mismatch vs reference"
    # Internal consistency (tight): z and kl follow exactly from kernel mu/sigma.
    assert jnp.allclose(z, mu + sigma * eps, atol=1e-5, rtol=1e-5), "z wiring mismatch"
    kl_from_kernel = jnp.sum(sigma ** 2 + mu ** 2 - jnp.log(sigma) - 0.5)
    assert jnp.allclose(kl, kl_from_kernel, atol=1e-2, rtol=1e-3), "kl reduction mismatch"

    print("KERNEL_OK")
</pallas_src>

<mosaic_0001>
module attributes {stable_mosaic.version = 11 : i64} {
  func.func @kernel(%arg0: i32, %arg1: memref<16x32xf32, #tpu.memory_space<vmem>>, %arg2: memref<32x64xbf16, #tpu.memory_space<vmem>>, %arg3: memref<1x64xf32, #tpu.memory_space<vmem>>, %arg4: memref<64x48xbf16, #tpu.memory_space<vmem>>, %arg5: memref<1x48xf32, #tpu.memory_space<vmem>>, %arg6: memref<48x32xbf16, #tpu.memory_space<vmem>>, %arg7: memref<1x32xf32, #tpu.memory_space<vmem>>, %arg8: memref<32x32xbf16, #tpu.memory_space<vmem>>, %arg9: memref<1x32xf32, #tpu.memory_space<vmem>>, %arg10: memref<16x16xf32, #tpu.memory_space<vmem>>, %arg11: memref<16x48xf32, #tpu.memory_space<vmem>>, %arg12: memref<16x1xf32, #tpu.memory_space<vmem>>) attributes {dimension_semantics = [#tpu.dimension_semantics<parallel>], iteration_bounds = array<i64: 1>, scalar_prefetch = 0 : i64, scratch_operands = 0 : i64, tpu.core_type = #tpu.core_type<tc>, window_params = [{transform_indices = @transform_0, window_bounds = array<i64: 16, 32>}, {pipeline_mode = #tpu.pipeline_mode<synchronous>, transform_indices = @transform_1, window_bounds = array<i64: 32, 64>}, {pipeline_mode = #tpu.pipeline_mode<synchronous>, transform_indices = @transform_2, window_bounds = array<i64: 1, 64>}, {pipeline_mode = #tpu.pipeline_mode<synchronous>, transform_indices = @transform_3, window_bounds = array<i64: 64, 48>}, {pipeline_mode = #tpu.pipeline_mode<synchronous>, transform_indices = @transform_4, window_bounds = array<i64: 1, 48>}, {pipeline_mode = #tpu.pipeline_mode<synchronous>, transform_indices = @transform_5, window_bounds = array<i64: 48, 32>}, {pipeline_mode = #tpu.pipeline_mode<synchronous>, transform_indices = @transform_6, window_bounds = array<i64: 1, 32>}, {pipeline_mode = #tpu.pipeline_mode<synchronous>, transform_indices = @transform_7, window_bounds = array<i64: 32, 32>}, {pipeline_mode = #tpu.pipeline_mode<synchronous>, transform_indices = @transform_8, window_bounds = array<i64: 1, 32>}, {transform_indices = @transform_9, window_bounds = array<i64: 16, 16>}, {transform_indices = @transform_10, window_bounds = array<i64: 16, 48>}, {transform_indices = @transform_11, window_bounds = array<i64: 16, 1>}]} {
    %c0 = arith.constant 0 : index
    %c0_0 = arith.constant 0 : index
    %0 = vector.load %arg1[%c0, %c0_0] : memref<16x32xf32, #tpu.memory_space<vmem>>, vector<16x32xf32>
    %1 = arith.truncf %0 : vector<16x32xf32> to vector<16x32xbf16>
    %c0_1 = arith.constant 0 : index
    %c0_2 = arith.constant 0 : index
    %2 = vector.load %arg2[%c0_1, %c0_2] : memref<32x64xbf16, #tpu.memory_space<vmem>>, vector<32x64xbf16>
    %cst = arith.constant dense<0.000000e+00> : vector<16x64xf32>
    %3 = tpu.matmul %1, %2, %cst {dimension_numbers = #tpu.dot_dimension_numbers<[1], [0], [0], [1], [0, 0, 1, 1], [], []>} : vector<16x32xbf16>, vector<32x64xbf16>, vector<16x64xf32> -> vector<16x64xf32>
    %c0_3 = arith.constant 0 : index
    %c0_4 = arith.constant 0 : index
    %4 = vector.load %arg3[%c0_3, %c0_4] : memref<1x64xf32, #tpu.memory_space<vmem>>, vector<1x64xf32>
    %5 = vector.broadcast %4 : vector<1x64xf32> to vector<16x64xf32>
    %6 = arith.addf %3, %5 : vector<16x64xf32>
    %7 = arith.truncf %6 : vector<16x64xf32> to vector<16x64xbf16>
    %c0_5 = arith.constant 0 : index
    %c0_6 = arith.constant 0 : index
    %8 = vector.load %arg4[%c0_5, %c0_6] : memref<64x48xbf16, #tpu.memory_space<vmem>>, vector<64x48xbf16>
    %cst_7 = arith.constant dense<0.000000e+00> : vector<16x48xf32>
    %9 = tpu.matmul %7, %8, %cst_7 {dimension_numbers = #tpu.dot_dimension_numbers<[1], [0], [0], [1], [0, 0, 1, 1], [], []>} : vector<16x64xbf16>, vector<64x48xbf16>, vector<16x48xf32> -> vector<16x48xf32>
    %c0_8 = arith.constant 0 : index
    %c0_9 = arith.constant 0 : index
    %10 = vector.load %arg5[%c0_8, %c0_9] : memref<1x48xf32, #tpu.memory_space<vmem>>, vector<1x48xf32>
    %11 = vector.broadcast %10 : vector<1x48xf32> to vector<16x48xf32>
    %12 = arith.addf %9, %11 : vector<16x48xf32>
    %cst_10 = arith.constant 0.000000e+00 : f32
    %13 = vector.broadcast %cst_10 : f32 to vector<16x48xf32>
    %14 = arith.maximumf %12, %13 : vector<16x48xf32>
    %15 = arith.truncf %14 : vector<16x48xf32> to vector<16x48xbf16>
    %c0_11 = arith.constant 0 : index
    %c0_12 = arith.constant 0 : index
    %16 = vector.load %arg6[%c0_11, %c0_12] : memref<48x32xbf16, #tpu.memory_space<vmem>>, vector<48x32xbf16>
    %cst_13 = arith.constant dense<0.000000e+00> : vector<16x32xf32>
    %17 = tpu.matmul %15, %16, %cst_13 {dimension_numbers = #tpu.dot_dimension_numbers<[1], [0], [0], [1], [0, 0, 1, 1], [], []>} : vector<16x48xbf16>, vector<48x32xbf16>, vector<16x32xf32> -> vector<16x32xf32>
    %c0_14 = arith.constant 0 : index
    %c0_15 = arith.constant 0 : index
    %18 = vector.load %arg7[%c0_14, %c0_15] : memref<1x32xf32, #tpu.memory_space<vmem>>, vector<1x32xf32>
    %19 = vector.broadcast %18 : vector<1x32xf32> to vector<16x32xf32>
    %20 = arith.addf %17, %19 : vector<16x32xf32>
    %cst_16 = arith.constant 5.000000e-01 : f32
    %21 = vector.broadcast %cst_16 : f32 to vector<16x32xf32>
    %22 = arith.mulf %21, %20 : vector<16x32xf32>
    %23 = math.tanh %22 : vector<16x32xf32>
    %cst_17 = arith.constant 1.000000e+00 : f32
    %24 = vector.broadcast %cst_17 : f32 to vector<16x32xf32>
    %25 = arith.addf %23, %24 : vector<16x32xf32>
    %cst_18 = arith.constant 5.000000e-01 : f32
    %26 = vector.broadcast %cst_18 : f32 to vector<16x32xf32>
    %27 = arith.mulf %26, %25 : vector<16x32xf32>
    %28 = arith.truncf %27 : vector<16x32xf32> to vector<16x32xbf16>
    %c0_19 = arith.constant 0 : index
    %c0_20 = arith.constant 0 : index
    %29 = vector.load %arg8[%c0_19, %c0_20] : memref<32x32xbf16, #tpu.memory_space<vmem>>, vector<32x32xbf16>
    %cst_21 = arith.constant dense<0.000000e+00> : vector<16x32xf32>
    %30 = tpu.matmul %28, %29, %cst_21 {dimension_numbers = #tpu.dot_dimension_numbers<[1], [0], [0], [1], [0, 0, 1, 1], [], []>} : vector<16x32xbf16>, vector<32x32xbf16>, vector<16x32xf32> -> vector<16x32xf32>
    %c0_22 = arith.constant 0 : index
    %c0_23 = arith.constant 0 : index
    %31 = vector.load %arg9[%c0_22, %c0_23] : memref<1x32xf32, #tpu.memory_space<vmem>>, vector<1x32xf32>
    %32 = vector.broadcast %31 : vector<1x32xf32> to vector<16x32xf32>
    %33 = arith.addf %30, %32 : vector<16x32xf32>
    %34 = vector.extract_strided_slice %33 {offsets = [0, 0], sizes = [16, 16], strides = [1, 1]} : vector<16x32xf32> to vector<16x16xf32>
    %35 = vector.extract_strided_slice %33 {offsets = [0, 16], sizes = [16, 16], strides = [1, 1]} : vector<16x32xf32> to vector<16x16xf32>
    %36 = math.exp %35 : vector<16x16xf32>
    %cst_24 = arith.constant 9.99999997E-7 : f32
    %37 = vector.broadcast %cst_24 : f32 to vector<16x16xf32>
    %38 = arith.addf %36, %37 : vector<16x16xf32>
    %c0_25 = arith.constant 0 : index
    %c0_26 = arith.constant 0 : index
    %39 = vector.load %arg10[%c0_25, %c0_26] : memref<16x16xf32, #tpu.memory_space<vmem>>, vector<16x16xf32>
    %40 = arith.mulf %38, %39 : vector<16x16xf32>
    %41 = arith.addf %34, %40 : vector<16x16xf32>
    %c0_27 = arith.constant 0 : index
    %c0_28 = arith.constant 0 : index
    %42 = vector.load %arg11[%c0_27, %c0_28] : memref<16x48xf32, #tpu.memory_space<vmem>>, vector<16x16xf32>
    tpu.vector_store %arg11[%c0_27, %c0_28], %41 {strides = array<i32>} : memref<16x48xf32, #tpu.memory_space<vmem>>, vector<16x16xf32>,
    %c0_29 = arith.constant 0 : index
    %c16 = arith.constant 16 : index
    %43 = vector.load %arg11[%c0_29, %c16] : memref<16x48xf32, #tpu.memory_space<vmem>>, vector<16x16xf32>
    tpu.vector_store %arg11[%c0_29, %c16], %34 {strides = array<i32>} : memref<16x48xf32, #tpu.memory_space<vmem>>, vector<16x16xf32>,
    %c0_30 = arith.constant 0 : index
    %c32 = arith.constant 32 : index
    %44 = vector.load %arg11[%c0_30, %c32] : memref<16x48xf32, #tpu.memory_space<vmem>>, vector<16x16xf32>
    tpu.vector_store %arg11[%c0_30, %c32], %38 {strides = array<i32>} : memref<16x48xf32, #tpu.memory_space<vmem>>, vector<16x16xf32>,
    %45 = arith.mulf %38, %38 : vector<16x16xf32>
    %46 = arith.mulf %34, %34 : vector<16x16xf32>
    %47 = arith.addf %45, %46 : vector<16x16xf32>
    %48 = math.log %38 : vector<16x16xf32>
    %49 = arith.subf %47, %48 : vector<16x16xf32>
    %cst_31 = arith.constant 5.000000e-01 : f32
    %50 = vector.broadcast %cst_31 : f32 to vector<16x16xf32>
    %51 = arith.subf %49, %50 : vector<16x16xf32>
    %cst_32 = arith.constant dense<0.000000e+00> : vector<16xf32>
    %52 = vector.multi_reduction <add>, %51, %cst_32 [1] : vector<16x16xf32> to vector<16xf32>
    %53 = vector.shape_cast %52 : vector<16xf32> to vector<16x1xf32>
    %c0_33 = arith.constant 0 : index
    %c0_34 = arith.constant 0 : index
    %54 = vector.load %arg12[%c0_33, %c0_34] : memref<16x1xf32, #tpu.memory_space<vmem>>, vector<16x1xf32>
    tpu.vector_store %arg12[%c0_33, %c0_34], %53 {strides = array<i32>} : memref<16x1xf32, #tpu.memory_space<vmem>>, vector<16x1xf32>,
    return
  }
  func.func @transform_0(%arg0: i32) -> (i32, i32) {
    %c0_i32 = arith.constant 0 : i32
    %c0_i32_0 = arith.constant 0 : i32
    return %arg0, %c0_i32 : i32, i32
  }
  func.func @transform_1(%arg0: i32) -> (i32, i32) {
    %c0_i32 = arith.constant 0 : i32
    %c0_i32_0 = arith.constant 0 : i32
    %c0_i32_1 = arith.constant 0 : i32
    return %c0_i32, %c0_i32_0 : i32, i32
  }
  func.func @transform_2(%arg0: i32) -> (i32, i32) {
    %c0_i32 = arith.constant 0 : i32
    %c0_i32_0 = arith.constant 0 : i32
    %c0_i32_1 = arith.constant 0 : i32
    return %c0_i32, %c0_i32_0 : i32, i32
  }
  func.func @transform_3(%arg0: i32) -> (i32, i32) {
    %c0_i32 = arith.constant 0 : i32
    %c0_i32_0 = arith.constant 0 : i32
    %c0_i32_1 = arith.constant 0 : i32
    return %c0_i32, %c0_i32_0 : i32, i32
  }
  func.func @transform_4(%arg0: i32) -> (i32, i32) {
    %c0_i32 = arith.constant 0 : i32
    %c0_i32_0 = arith.constant 0 : i32
    %c0_i32_1 = arith.constant 0 : i32
    return %c0_i32, %c0_i32_0 : i32, i32
  }
  func.func @transform_5(%arg0: i32) -> (i32, i32) {
    %c0_i32 = arith.constant 0 : i32
    %c0_i32_0 = arith.constant 0 : i32
    %c0_i32_1 = arith.constant 0 : i32
    return %c0_i32, %c0_i32_0 : i32, i32
  }
  func.func @transform_6(%arg0: i32) -> (i32, i32) {
    %c0_i32 = arith.constant 0 : i32
    %c0_i32_0 = arith.constant 0 : i32
    %c0_i32_1 = arith.constant 0 : i32
    return %c0_i32, %c0_i32_0 : i32, i32
  }
  func.func @transform_7(%arg0: i32) -> (i32, i32) {
    %c0_i32 = arith.constant 0 : i32
    %c0_i32_0 = arith.constant 0 : i32
    %c0_i32_1 = arith.constant 0 : i32
    return %c0_i32, %c0_i32_0 : i32, i32
  }
  func.func @transform_8(%arg0: i32) -> (i32, i32) {
    %c0_i32 = arith.constant 0 : i32
    %c0_i32_0 = arith.constant 0 : i32
    %c0_i32_1 = arith.constant 0 : i32
    return %c0_i32, %c0_i32_0 : i32, i32
  }
  func.func @transform_9(%arg0: i32) -> (i32, i32) {
    %c0_i32 = arith.constant 0 : i32
    %c0_i32_0 = arith.constant 0 : i32
    return %arg0, %c0_i32 : i32, i32
  }
  func.func @transform_10(%arg0: i32) -> (i32, i32) {
    %c0_i32 = arith.constant 0 : i32
    %c0_i32_0 = arith.constant 0 : i32
    return %arg0, %c0_i32 : i32, i32
  }
  func.func @transform_11(%arg0: i32) -> (i32, i32) {
    %c0_i32 = arith.constant 0 : i32
    %c0_i32_0 = arith.constant 0 : i32
    return %arg0, %c0_i32 : i32, i32
  }
}

</mosaic_0001>

<llo_original>
// kernel: tpu_custom_call.1
$region0: #{tpu_custom_call.1}
  #allocation0 [shape = 'u32[]', space=smem, size = 0x4, offset = 0x4, fixed_abs, tag = 'smem constant byte address 0x4 - core index']
  #allocation1 [shape = 'u32[144,128]{1,0:T(1,128)}', space=vmem, size = 0x12000, scoped, tag = 'internal scratch']
  %s0 = inlined_call_operand.vmem [shape: f32[16,32], index: 0, kind: input, shape index: {}]
  %s1 = inlined_call_operand.vmem [shape: bf16[32,64], index: 1, kind: input, shape index: {}]
  %s2 = inlined_call_operand.vmem [shape: f32[1,64], index: 2, kind: input, shape index: {}]
  %s3 = inlined_call_operand.vmem [shape: bf16[64,48], index: 3, kind: input, shape index: {}]
  %s4 = inlined_call_operand.vmem [shape: f32[1,48], index: 4, kind: input, shape index: {}]
  %s5 = inlined_call_operand.vmem [shape: bf16[48,32], index: 5, kind: input, shape index: {}]
  %s6 = inlined_call_operand.vmem [shape: f32[1,32], index: 6, kind: input, shape index: {}]
  %s7 = inlined_call_operand.vmem [shape: bf16[32,32], index: 7, kind: input, shape index: {}]
  %s8 = inlined_call_operand.vmem [shape: f32[1,32], index: 8, kind: input, shape index: {}]
  %s9 = inlined_call_operand.vmem [shape: f32[16,16], index: 9, kind: input, shape index: {}]
  %s10 = inlined_call_operand.hbm [shape: f32[16,48], index: 10, kind: output, shape index: {0}]
  %s11 = inlined_call_operand.vmem [shape: f32[16,1], index: 11, kind: output, shape index: {1}]
  %12 = xla_tuple %s10, %s11
  %s13 = sld [smem:[#allocation0]]
  $region58: #{tpu_custom_call.1} parent=0
    _
  %s15 = ssub.s32 1, %s13
  %s16 = scalar_select 0, %s15, %s13
  $region1: #{tpu_custom_call.1} parent=0
    #allocation2 [shape = 'u8[8192]{0}', space=vmem, size = 0x2000, scoped, tag = 'output window, operand 0, single buffered']
    #allocation3 [shape = 's32[1]{0}', space=sflag, size = 0x4, scoped, tag = 'scoped memory for tpu_custom_call.1']
    %17 = vsyncpa [#allocation3], 0
    // Predicated region
    $region2: #{tpu_custom_call.1} parent=1 // pred_check
      _
    $region3: #{tpu_custom_call.1} parent=1 // pred_check_branch
      %19 = sbr.rel (0) target = $region5
    $region4: #{tpu_custom_call.1} parent=1 // pred_region
      _
    $region5: #{tpu_custom_call.1} parent=1 // pred_fallthru
      _
    // Predicated region
    $region6: #{tpu_custom_call.1} parent=1 // pred_check
      _
    $region7: #{tpu_custom_call.1} parent=1 // pred_check_branch
      %21 = sbr.rel (0) target = $region9
    $region8: #{tpu_custom_call.1} parent=1 // pred_region
      _
    $region9: #{tpu_custom_call.1} parent=1 // pred_fallthru
      _
    // Predicated region
    $region10: #{tpu_custom_call.1} parent=1 // pred_check
      _
    $region11: #{tpu_custom_call.1} parent=1 // pred_check_branch
      %23 = sbr.rel (0) target = $region13
    $region12: #{tpu_custom_call.1} parent=1 // pred_region
      _
    $region13: #{tpu_custom_call.1} parent=1 // pred_fallthru
      _
    // Predicated region
    $region14: #{tpu_custom_call.1} parent=1 // pred_check
      _
    $region15: #{tpu_custom_call.1} parent=1 // pred_check_branch
      %25 = sbr.rel (0) target = $region17
    $region16: #{tpu_custom_call.1} parent=1 // pred_region
      _
    $region17: #{tpu_custom_call.1} parent=1 // pred_fallthru
      _
    // Predicated region
    $region18: #{tpu_custom_call.1} parent=1 // pred_check
      _
    $region19: #{tpu_custom_call.1} parent=1 // pred_check_branch
      %27 = sbr.rel (0) target = $region21
    $region20: #{tpu_custom_call.1} parent=1 // pred_region
      _
    $region21: #{tpu_custom_call.1} parent=1 // pred_fallthru
      _
    // Predicated region
    $region22: #{tpu_custom_call.1} parent=1 // pred_check
      _
    $region23: #{tpu_custom_call.1} parent=1 // pred_check_branch
      %29 = sbr.rel (0) target = $region25
    $region24: #{tpu_custom_call.1} parent=1 // pred_region
      _
    $region25: #{tpu_custom_call.1} parent=1 // pred_fallthru
      _
    // Predicated region
    $region26: #{tpu_custom_call.1} parent=1 // pred_check
      _
    $region27: #{tpu_custom_call.1} parent=1 // pred_check_branch
      %31 = sbr.rel (0) target = $region29
    $region28: #{tpu_custom_call.1} parent=1 // pred_region
      _
    $region29: #{tpu_custom_call.1} parent=1 // pred_fallthru
      _
    // Predicated region
    $region30: #{tpu_custom_call.1} parent=1 // pred_check
      _
    $region31: #{tpu_custom_call.1} parent=1 // pred_check_branch
      %33 = sbr.rel (0) target = $region33
    $region32: #{tpu_custom_call.1} parent=1 // pred_region
      _
    $region33: #{tpu_custom_call.1} parent=1 // pred_fallthru
      _
    // Predicated region
    $region34: #{tpu_custom_call.1} parent=1 // pred_check
      _
    $region35: #{tpu_custom_call.1} parent=1 // pred_check_branch
      %35 = sbr.rel (0) target = $region37
    $region36: #{tpu_custom_call.1} parent=1 // pred_region
      _
    $region37: #{tpu_custom_call.1} parent=1 // pred_fallthru
      _
    // Predicated region
    $region38: #{tpu_custom_call.1} parent=1 // pred_check
      _
    $region39: #{tpu_custom_call.1} parent=1 // pred_check_branch
      %37 = sbr.rel (0) target = $region41
    $region40: #{tpu_custom_call.1} parent=1 // pred_region
      _
    $region41: #{tpu_custom_call.1} parent=1 // pred_fallthru
      _
    %v39 = vld [vmem:[%s0] sm:$0xff]
    %v40 = vld [vmem:[%s0 + $0x8] sm:$0xff]
    %v41 = vpack.c.bf16 %v40, %v39
    %v42 = vld [vmem:[%s1] sm:$0xf]
    %v43 = vld [vmem:[%s1 + $0x4] sm:$0xf]
    %v44 = vld [vmem:[%s1 + $0x8] sm:$0xf]
    %v45 = vld [vmem:[%s1 + $0xc] sm:$0xf]
    %v46 = vld [vmem:[%s2] sm:$0x1]
    %v48 = vlaneseq
    %v49 = vshrl.u32 %v48, 7
    %v50 = vsub.s32 0, %v49
    %v51 = vrot.slane %v46, %v50
    %v57 = vunpack.c.l.b16 %v42
    %v58 = vunpack.c.l.b16 %v43
    %v59 = vunpack.c.l.b16 %v44
    %v60 = vunpack.c.l.b16 %v45
    %v61 = vpack.c.b16 %v58, %v57
    %v62 = vpack.c.b16 %v60, %v59
    %vm65 = vcmask 261120
    %v67 = vsel %vm65, %v41, 0
    %69 = vmatprep.subr.bf16.mxu0 0
    %70 = vmatpush1.bf16.msra.mxu0 %v61
    %71 = vmatprep.subr.bf16.mxu0 0
    %72 = vmatpush1.bf16.msra.mxu0 %v62
    %73 = vmatprep.subr.bf16.mxu0 0
    %74 = vmatpush1.bf16.msra.mxu0 0
    %75 = vmatprep.subr.bf16.mxu0 0
    %76 = vmatpush1.bf16.msra.mxu0 0
    %77 = vmatprep.subr.bf16.mxu0 0
    %78 = vmatpush1.bf16.msra.mxu0 0
    %79 = vmatprep.subr.bf16.mxu0 0
    %80 = vmatpush1.bf16.msra.mxu0 0
    %81 = vmatprep.subr.bf16.mxu0 0
    %82 = vmatpush1.bf16.msra.mxu0 0
    %83 = vmatprep.subr.bf16.mxu0 0
    %84 = vmatpush1.bf16.msra.mxu0 0
    %85 = vmatprep.subr.bf16.mxu0 0
    %86 = vmatpush1.bf16.msra.mxu0 0
    %87 = vmatprep.subr.bf16.mxu0 0
    %88 = vmatpush1.bf16.msra.mxu0 0
    %89 = vmatprep.subr.bf16.mxu0 0
    %90 = vmatpush1.bf16.msra.mxu0 0
    %91 = vmatprep.subr.bf16.mxu0 0
    %92 = vmatpush1.bf16.msra.mxu0 0
    %93 = vmatprep.subr.bf16.mxu0 0
    %94 = vmatpush1.bf16.msra.mxu0 0
    %95 = vmatprep.subr.bf16.mxu0 0
    %96 = vmatpush1.bf16.msra.mxu0 0
    %97 = vmatprep.subr.bf16.mxu0 0
    %98 = vmatpush1.bf16.msra.mxu0 0
    %99 = vmatprep.subr.bf16.mxu0 0
    %100 = vmatpush1.bf16.msra.mxu0 0
    %101 = vmatprep.mubr.bf16.mxu0 0
    %102 = vmatmul.mubr.bf16.gmra.mrb[0].mxu0 %v67
    %v103 = vpop.f32.mrb[0].mxu0
    %v104 = vadd.f32 %v51, %v103
    %v105 = vpop.f32.mrb[0].mxu0
    %v106 = vpop.f32.mrb[0].mxu0
    %v107 = vadd.f32 %v51, %v106
    %v108 = vpop.f32.mrb[0].mxu0
    %109 = vdwg.mxu0
    %v110 = vpack.c.bf16 %v107, %v104
    %v111 = vld [vmem:[%s3] sm:$0xf]
    %v112 = vld [vmem:[%s3 + $0x4] sm:$0xf]
    %v113 = vld [vmem:[%s3 + $0x8] sm:$0xf]
    %v114 = vld [vmem:[%s3 + $0xc] sm:$0xf]
    %v115 = vld [vmem:[%s3 + $0x10] sm:$0xf]
    %v116 = vld [vmem:[%s3 + $0x14] sm:$0xf]
    %v117 = vld [vmem:[%s3 + $0x18] sm:$0xf]
    %v118 = vld [vmem:[%s3 + $0x1c] sm:$0xf]
    %v119 = vld [vmem:[%s4] sm:$0x1]
    %v121 = vlaneseq
    %v122 = vshrl.u32 %v121, 7
    %v123 = vsub.s32 0, %v122
    %v124 = vrot.slane %v119, %v123
    %v134 = vunpack.c.l.b16 %v111
    %v135 = vunpack.c.l.b16 %v112
    %v136 = vunpack.c.l.b16 %v113
    %v137 = vunpack.c.l.b16 %v114
    %v138 = vunpack.c.l.b16 %v115
    %v139 = vunpack.c.l.b16 %v116
    %v140 = vunpack.c.l.b16 %v117
    %v141 = vunpack.c.l.b16 %v118
    %v142 = vpack.c.b16 %v135, %v134
    %v143 = vpack.c.b16 %v137, %v136
    %v144 = vpack.c.b16 %v139, %v138
    %v145 = vpack.c.b16 %v141, %v140
    %vm150 = vcmask 523264
    %v152 = vsel %vm150, %v110, 0
    %154 = vmatprep.subr.bf16.mxu0 0
    %155 = vmatpush1.bf16.msra.mxu0 %v142
    %156 = vmatprep.subr.bf16.mxu0 0
    %157 = vmatpush1.bf16.msra.mxu0 %v143
    %158 = vmatprep.subr.bf16.mxu0 0
    %159 = vmatpush1.bf16.msra.mxu0 %v144
    %160 = vmatprep.subr.bf16.mxu0 0
    %161 = vmatpush1.bf16.msra.mxu0 %v145
    %162 = vmatprep.subr.bf16.mxu0 0
    %163 = vmatpush1.bf16.msra.mxu0 0
    %164 = vmatprep.subr.bf16.mxu0 0
    %165 = vmatpush1.bf16.msra.mxu0 0
    %166 = vmatprep.subr.bf16.mxu0 0
    %167 = vmatpush1.bf16.msra.mxu0 0
    %168 = vmatprep.subr.bf16.mxu0 0
    %169 = vmatpush1.bf16.msra.mxu0 0
    %170 = vmatprep.subr.bf16.mxu0 0
    %171 = vmatpush1.bf16.msra.mxu0 0
    %172 = vmatprep.subr.bf16.mxu0 0
    %173 = vmatpush1.bf16.msra.mxu0 0
    %174 = vmatprep.subr.bf16.mxu0 0
    %175 = vmatpush1.bf16.msra.mxu0 0
    %176 = vmatprep.subr.bf16.mxu0 0
    %177 = vmatpush1.bf16.msra.mxu0 0
    %178 = vmatprep.subr.bf16.mxu0 0
    %179 = vmatpush1.bf16.msra.mxu0 0
    %180 = vmatprep.subr.bf16.mxu0 0
    %181 = vmatpush1.bf16.msra.mxu0 0
    %182 = vmatprep.subr.bf16.mxu0 0
    %183 = vmatpush1.bf16.msra.mxu0 0
    %184 = vmatprep.subr.bf16.mxu0 0
    %185 = vmatpush1.bf16.msra.mxu0 0
    %186 = vmatprep.mubr.bf16.mxu0 0
    %187 = vmatmul.mubr.bf16.gmra.mrb[0].mxu0 %v152
    %v188 = vpop.f32.mrb[0].mxu0
    %v189 = vadd.f32 %v124, %v188
    %v190 = vpop.f32.mrb[0].mxu0
    %v191 = vpop.f32.mrb[0].mxu0
    %v192 = vadd.f32 %v124, %v191
    %v193 = vpop.f32.mrb[0].mxu0
    %194 = vdwg.mxu0
    %v195 = vmax.f32 %v189, 0.0
    %v196 = vmax.f32 %v192, 0.0
    %v197 = vpack.c.bf16 %v196, %v195
    %v198 = vld [vmem:[%s5] sm:$0xf]
    %v199 = vld [vmem:[%s5 + $0x4] sm:$0xf]
    %v200 = vld [vmem:[%s5 + $0x8] sm:$0xf]
    %v201 = vld [vmem:[%s5 + $0xc] sm:$0xf]
    %v202 = vld [vmem:[%s5 + $0x10] sm:$0xf]
    %v203 = vld [vmem:[%s5 + $0x14] sm:$0xf]
    %v204 = vld [vmem:[%s6] sm:$0x1]
    %v206 = vlaneseq
    %v207 = vshrl.u32 %v206, 7
    %v208 = vsub.s32 0, %v207
    %v209 = vrot.slane %v204, %v208
    %v217 = vunpack.c.l.b16 %v198
    %v218 = vunpack.c.l.b16 %v199
    %v219 = vunpack.c.l.b16 %v200
    %v220 = vunpack.c.l.b16 %v201
    %v221 = vunpack.c.l.b16 %v202
    %v222 = vunpack.c.l.b16 %v203
    %v223 = vpack.c.b16 %v218, %v217
    %v224 = vpack.c.b16 %v220, %v219
    %v225 = vpack.c.b16 %v222, %v221
    %vm229 = vcmask 392192
    %v231 = vsel %vm229, %v197, 0
    %233 = vmatprep.subr.bf16.mxu0 0
    %234 = vmatpush1.bf16.msra.mxu0 %v223
    %235 = vmatprep.subr.bf16.mxu0 0
    %236 = vmatpush1.bf16.msra.mxu0 %v224
    %237 = vmatprep.subr.bf16.mxu0 0
    %238 = vmatpush1.bf16.msra.mxu0 %v225
    %239 = vmatprep.subr.bf16.mxu0 0
    %240 = vmatpush1.bf16.msra.mxu0 0
    %241 = vmatprep.subr.bf16.mxu0 0
    %242 = vmatpush1.bf16.msra.mxu0 0
    %243 = vmatprep.subr.bf16.mxu0 0
    %244 = vmatpush1.bf16.msra.mxu0 0
    %245 = vmatprep.subr.bf16.mxu0 0
    %246 = vmatpush1.bf16.msra.mxu0 0
    %247 = vmatprep.subr.bf16.mxu0 0
    %248 = vmatpush1.bf16.msra.mxu0 0
    %249 = vmatprep.subr.bf16.mxu0 0
    %250 = vmatpush1.bf16.msra.mxu0 0
    %251 = vmatprep.subr.bf16.mxu0 0
    %252 = vmatpush1.bf16.msra.mxu0 0
    %253 = vmatprep.subr.bf16.mxu0 0
    %254 = vmatpush1.bf16.msra.mxu0 0
    %255 = vmatprep.subr.bf16.mxu0 0
    %256 = vmatpush1.bf16.msra.mxu0 0
    %257 = vmatprep.subr.bf16.mxu0 0
    %258 = vmatpush1.bf16.msra.mxu0 0
    %259 = vmatprep.subr.bf16.mxu0 0
    %260 = vmatpush1.bf16.msra.mxu0 0
    %261 = vmatprep.subr.bf16.mxu0 0
    %262 = vmatpush1.bf16.msra.mxu0 0
    %263 = vmatprep.subr.bf16.mxu0 0
    %264 = vmatpush1.bf16.msra.mxu0 0
    %265 = vmatprep.mubr.bf16.mxu0 0
    %266 = vmatmul.mubr.bf16.gmra.mrb[0].mxu0 %v231
    %v267 = vpop.f32.mrb[0].mxu0
    %v268 = vadd.f32 %v209, %v267
    %v269 = vpop.f32.mrb[0].mxu0
    %v270 = vpop.f32.mrb[0].mxu0
    %v271 = vadd.f32 %v209, %v270
    %v272 = vpop.f32.mrb[0].mxu0
    %273 = vdwg.mxu0
    %v274 = vmul.f32 %v268, 0.5
    %v275 = vmul.f32 %v271, 0.5
    %v276 = vtanh.pop %v274
    %v277 = vtanh.pop %v275
    %v278 = vadd.f32 %v276, 1.0
    %v279 = vadd.f32 %v277, 1.0
    %v280 = vmul.f32 %v278, 0.5
    %v281 = vmul.f32 %v279, 0.5
    %v282 = vpack.c.bf16 %v281, %v280
    %v283 = vld [vmem:[%s7] sm:$0xf]
    %v284 = vld [vmem:[%s7 + $0x4] sm:$0xf]
    %v285 = vld [vmem:[%s7 + $0x8] sm:$0xf]
    %v286 = vld [vmem:[%s7 + $0xc] sm:$0xf]
    %v287 = vld [vmem:[%s8] sm:$0x1]
    %v289 = vlaneseq
    %v290 = vshrl.u32 %v289, 7
    %v291 = vsub.s32 0, %v290
    %v292 = vrot.slane %v287, %v291
    %v298 = vunpack.c.l.b16 %v283
    %v299 = vunpack.c.l.b16 %v284
    %v300 = vunpack.c.l.b16 %v285
    %v301 = vunpack.c.l.b16 %v286
    %v302 = vpack.c.b16 %v299, %v298
    %v303 = vpack.c.b16 %v301, %v300
    %v307 = vsel %vm65, %v282, 0
    %309 = vmatprep.subr.bf16.mxu0 0
    %310 = vmatpush1.bf16.msra.mxu0 %v302
    %311 = vmatprep.subr.bf16.mxu0 0
    %312 = vmatpush1.bf16.msra.mxu0 %v303
    %313 = vmatprep.subr.bf16.mxu0 0
    %314 = vmatpush1.bf16.msra.mxu0 0
    %315 = vmatprep.subr.bf16.mxu0 0
    %316 = vmatpush1.bf16.msra.mxu0 0
    %317 = vmatprep.subr.bf16.mxu0 0
    %318 = vmatpush1.bf16.msra.mxu0 0
    %319 = vmatprep.subr.bf16.mxu0 0
    %320 = vmatpush1.bf16.msra.mxu0 0
    %321 = vmatprep.subr.bf16.mxu0 0
    %322 = vmatpush1.bf16.msra.mxu0 0
    %323 = vmatprep.subr.bf16.mxu0 0
    %324 = vmatpush1.bf16.msra.mxu0 0
    %325 = vmatprep.subr.bf16.mxu0 0
    %326 = vmatpush1.bf16.msra.mxu0 0
    %327 = vmatprep.subr.bf16.mxu0 0
    %328 = vmatpush1.bf16.msra.mxu0 0
    %329 = vmatprep.subr.bf16.mxu0 0
    %330 = vmatpush1.bf16.msra.mxu0 0
    %331 = vmatprep.subr.bf16.mxu0 0
    %332 = vmatpush1.bf16.msra.mxu0 0
    %333 = vmatprep.subr.bf16.mxu0 0
    %334 = vmatpush1.bf16.msra.mxu0 0
    %335 = vmatprep.subr.bf16.mxu0 0
    %336 = vmatpush1.bf16.msra.mxu0 0
    %337 = vmatprep.subr.bf16.mxu0 0
    %338 = vmatpush1.bf16.msra.mxu0 0
    %339 = vmatprep.subr.bf16.mxu0 0
    %340 = vmatpush1.bf16.msra.mxu0 0
    %341 = vmatprep.mubr.bf16.mxu0 0
    %342 = vmatmul.mubr.bf16.gmra.mrb[0].mxu0 %v307
    %v343 = vpop.f32.mrb[0].mxu0
    %v344 = vadd.f32 %v292, %v343
    %v345 = vpop.f32.mrb[0].mxu0
    %v346 = vpop.f32.mrb[0].mxu0
    %v347 = vadd.f32 %v292, %v346
    %v348 = vpop.f32.mrb[0].mxu0
    %349 = vdwg.mxu0
    %v350 = vmul.f32 %v344, 1.442695
    %v351 = vpow.pop %v350
    %v352 = vmul.f32 %v347, 1.442695
    %v353 = vpow.pop %v352
    %v354 = vadd.f32 %v351, 1e-06
    %v355 = vadd.f32 %v353, 1e-06
    %v356 = vld [vmem:[%s9] sm:$0xff]
    %v357 = vld [vmem:[%s9 + $0x8] sm:$0xff]
    %360 = vrot.lane.b32.xlu0 %v356, 16
    %v361 = vpop.permute.xlu0 %360
    %362 = vrot.lane.b32.xlu0 %v357, 16
    %v363 = vpop.permute.xlu0 %362
    %v366 = vmul.f32 %v354, %v361
    %v367 = vmul.f32 %v355, %v363
    %370 = vrot.lane.b32.xlu0 %v366, 112
    %v371 = vpop.permute.xlu0 %370
    %372 = vrot.lane.b32.xlu0 %v367, 112
    %v373 = vpop.permute.xlu0 %372
    %v376 = vadd.f32 %v344, %v371
    %v377 = vadd.f32 %v347, %v373
    %vm378 = vcmask 130048
    %379 = vst.msk [vmem:[#allocation2] sm:$0xff] %vm378, %v376
    %380 = vst.msk [vmem:[#allocation2 + $0x8] sm:$0xff] %vm378, %v377
    %383 = vrot.lane.b32.xlu0 %v344, 16
    %v384 = vpop.permute.xlu0 %383
    %385 = vrot.lane.b32.xlu0 %v347, 16
    %v386 = vpop.permute.xlu0 %385
    %vm389 = vcmask 261248
    %390 = vst.msk [vmem:[#allocation2] sm:$0xff] %vm389, %v384
    %391 = vst.msk [vmem:[#allocation2 + $0x8] sm:$0xff] %vm389, %v386
    %394 = vrot.lane.b32.xlu0 %v354, 16
    %v395 = vpop.permute.xlu0 %394
    %396 = vrot.lane.b32.xlu0 %v355, 16
    %v397 = vpop.permute.xlu0 %396
    %vm400 = vcmask 392448
    %401 = vst.msk [vmem:[#allocation2] sm:$0xff] %vm400, %v395
    %402 = vst.msk [vmem:[#allocation2 + $0x8] sm:$0xff] %vm400, %v397
    %v403 = vmul.f32 %v354, %v354
    %v404 = vmul.f32 %v355, %v355
    %v405 = vmul.f32 %v344, %v344
    %v406 = vmul.f32 %v347, %v347
    %409 = vrot.lane.b32.xlu0 %v405, 16
    %v410 = vpop.permute.xlu0 %409
    %411 = vrot.lane.b32.xlu0 %v406, 16
    %v412 = vpop.permute.xlu0 %411
    %v415 = vadd.f32 %v403, %v410
    %v416 = vadd.f32 %v404, %v412
    %v417 = vlog2.pop %v354
    %v418 = vmul.f32 %v417, 0.6931472
    %v419 = vlog2.pop %v355
    %v420 = vmul.f32 %v419, 0.6931472
    %v421 = vsub.f32 %v415, %v418
    %v422 = vsub.f32 %v416, %v420
    %v423 = vsub.f32 %v421, 0.5
    %v424 = vsub.f32 %v422, 0.5
    %427 = vrot.lane.b32.xlu0 %v423, 112
    %v428 = vpop.permute.xlu0 %427
    %429 = vrot.lane.b32.xlu0 %v424, 112
    %v430 = vpop.permute.xlu0 %429
    %v433 = vsel %vm378, %v428, 0.0
    %434 = vadd.xlane.f32.xlu0 %v433
    %v435 = vpop.xlane.xlu0 %434
    %v436 = vsel %vm378, %v430, 0.0
    %437 = vadd.xlane.f32.xlu0 %v436
    %v438 = vpop.xlane.xlu0 %437
    %vm439 = vcmask 7168
    %440 = vst.msk [vmem:[%s11] sm:$0xff] %vm439, %v435
    %441 = vst.msk [vmem:[%s11 + $0x8] sm:$0xff] %vm439, %v438
    // Predicated region
    $region42: #{tpu_custom_call.1} parent=1 // pred_check
      _
    $region43: #{tpu_custom_call.1} parent=1 // pred_check_branch
      %443 = sbr.rel (0) target = $region45
    $region44: #{tpu_custom_call.1} parent=1 // pred_region
      %s445 = ssub.s32 256, 256
      %446 = vsyncadd [#allocation3], %s445
      %s447 = sshll.u32 [#allocation2], 4
      %s448 = int_to_ptr.vmem [resolvable:$true] %s447
      %453 = dma.vmem_to_hbm [thread:$0]  %s448, 256, %s10, [#allocation3], 128, 128, 8
    $region45: #{tpu_custom_call.1} parent=1 // pred_fallthru
      _
    // Predicated region
    $region46: #{tpu_custom_call.1} parent=1 // pred_check
      _
    $region47: #{tpu_custom_call.1} parent=1 // pred_check_branch
      %455 = sbr.rel (0) target = $region49
    $region48: #{tpu_custom_call.1} parent=1 // pred_region
      _
    $region49: #{tpu_custom_call.1} parent=1 // pred_fallthru
      _
    // Predicated region
    $region50: #{tpu_custom_call.1} parent=1 // pred_check
      _
    $region51: #{tpu_custom_call.1} parent=1 // pred_check_branch
      %457 = sbr.rel (0) target = $region53
    $region52: #{tpu_custom_call.1} parent=1 // pred_region
      %458 = dma.done [#allocation3], 256
    $region53: #{tpu_custom_call.1} parent=1 // pred_fallthru
      _
    // Predicated region
    $region54: #{tpu_custom_call.1} parent=1 // pred_check
      _
    $region55: #{tpu_custom_call.1} parent=1 // pred_check_branch
      %460 = sbr.rel (0) target = $region57
    $region56: #{tpu_custom_call.1} parent=1 // pred_region
      _
    $region57: #{tpu_custom_call.1} parent=1 // pred_fallthru
      _
    %461 = vsyncpa [#allocation3], 1

</llo_original>
